<compile_context>
chip_gen: v5e
topology: v5e:2x2
jax: 0.10.0
libtpu: 0.0.40
codegen_flags: <defaults>
</compile_context>

<pallas_src>
import functools

import jax
import jax.numpy as jnp
from jax.experimental import pallas as pl
from jax.experimental.pallas import tpu as pltpu

LEAK = 0.01
EPS = 1e-5


def _round_up(x, m):
    return (x + m - 1) // m * m


def _leaky(x):
    return jnp.where(x > 0, x, LEAK * x)


def _bn_normalize(x, valid_b):
    """Training-mode BatchNorm1d normalization (biased batch variance).

    Statistics are computed over the first `valid_b` rows only, so zero-padded
    batch rows never perturb the result for real rows."""
    b_pad = x.shape[0]
    if valid_b == b_pad:
        mean = jnp.mean(x, axis=0, keepdims=True)
        d = x - mean
        var = jnp.mean(d * d, axis=0, keepdims=True)
    else:
        row = jax.lax.broadcasted_iota(jnp.int32, x.shape, 0)
        valid = row < valid_b
        inv_n = 1.0 / float(valid_b)
        xm = jnp.where(valid, x, 0.0)
        mean = jnp.sum(xm, axis=0, keepdims=True) * inv_n
        d = jnp.where(valid, x - mean, 0.0)
        var = jnp.sum(d * d, axis=0, keepdims=True) * inv_n
    return (x - mean) * jax.lax.rsqrt(var + EPS)


def _generator_kernel(z_ref, w1_ref, w2_ref, w3_ref, w4_ref, bias_ref, o_ref,
                      *, valid_b):
    n1 = w1_ref.shape[1]
    n2 = w2_ref.shape[1]
    n3 = w3_ref.shape[1]
    n4 = w4_ref.shape[1]

    # Layer 1: Linear -> LeakyReLU -> BN-normalize (affine folded into W2/b2).
    h = jnp.dot(z_ref[...], w1_ref[...], preferred_element_type=jnp.float32)
    h = h + bias_ref[0:1, 0:n1]
    h = _bn_normalize(_leaky(h), valid_b)

    # Layer 2
    h = jnp.dot(h.astype(jnp.bfloat16), w2_ref[...],
                preferred_element_type=jnp.float32)
    h = h + bias_ref[1:2, 0:n2]
    h = _bn_normalize(_leaky(h), valid_b)

    # Layer 3
    h = jnp.dot(h.astype(jnp.bfloat16), w3_ref[...],
                preferred_element_type=jnp.float32)
    h = h + bias_ref[2:3, 0:n3]
    h = _bn_normalize(_leaky(h), valid_b)

    # Layer 4 + Tanh
    h = jnp.dot(h.astype(jnp.bfloat16), w4_ref[...],
                preferred_element_type=jnp.float32)
    h = h + bias_ref[3:4, 0:n4]
    o_ref[...] = jnp.tanh(h).astype(o_ref.dtype)


def _full_spec(shape):
    nd = len(shape)
    return pl.BlockSpec(shape, lambda i, _nd=nd: (0,) * _nd)


@jax.jit
def generator_forward(z, params):
    """Fused 4-layer generator forward. Returns (B, output_dim) float32."""
    B, L = z.shape
    out_dim = params["w4"].shape[1]

    # ---- Trace-time pre-processing -----------------------------------------
    # Fold BatchNorm affine (gamma, beta) into the next Linear (exact, f32):
    #   (g*xhat + be) @ W + b == xhat @ (diag(g) @ W) + (be @ W + b)
    w1 = params["w1"].astype(jnp.float32)
    b1 = params["b1"].astype(jnp.float32)
    w2 = params["g1"].reshape(-1, 1) * params["w2"]
    b2 = params["b2"] + params["be1"] @ params["w2"]
    w3 = params["g2"].reshape(-1, 1) * params["w3"]
    b3 = params["b3"] + params["be2"] @ params["w3"]
    w4 = params["g3"].reshape(-1, 1) * params["w4"]
    b4 = params["b4"] + params["be3"] @ params["w4"]

    # Pad lane dims to multiples of 128 (full MXU tiles, unmasked stores) and
    # the batch to a sublane multiple of 8.
    L_pad = _round_up(max(L, 128), 128)
    OUT_pad = _round_up(max(out_dim, 128), 128)
    B_pad = _round_up(B, 8)

    z_p = jnp.zeros((B_pad, L_pad), jnp.float32).at[:B, :L].set(
        z.astype(jnp.float32))
    w1_p = jnp.zeros((L_pad, 128), jnp.float32).at[:L, :].set(w1)
    w4_p = jnp.zeros((512, OUT_pad), jnp.float32).at[:, :out_dim].set(w4)
    b4_p = jnp.zeros((1, OUT_pad), jnp.float32).at[:, :out_dim].set(b4)

    # Pack the four bias rows into one contiguous slab (fewer tiny DMAs).
    slab_w = max(512, OUT_pad)
    bias_slab = jnp.zeros((4, slab_w), jnp.float32)
    bias_slab = bias_slab.at[0, :128].set(b1.reshape(-1))
    bias_slab = bias_slab.at[1, :256].set(b2.reshape(-1))
    bias_slab = bias_slab.at[2, :512].set(b3.reshape(-1))
    bias_slab = bias_slab.at[3, :OUT_pad].set(b4_p.reshape(-1))

    # bf16 matmul operands (accumulation is f32 inside the kernel).
    z_bf = z_p.astype(jnp.bfloat16)
    w1_bf = w1_p.astype(jnp.bfloat16)
    w2_bf = w2.astype(jnp.bfloat16)
    w3_bf = w3.astype(jnp.bfloat16)
    w4_bf = w4_p.astype(jnp.bfloat16)

    # VMEM budget guard: single-shot design keeps the whole batch resident
    # (BatchNorm needs full-batch statistics). Sized against v7x's 64 MiB.
    act_bytes = B_pad * (L_pad + 128 + 256 + 512 + OUT_pad) * 4
    wgt_bytes = 2 * (L_pad * 128 + 128 * 256 + 256 * 512 + 512 * OUT_pad)
    if act_bytes + wgt_bytes > 20 * 1024 * 1024:
        raise ValueError(
            "batch too large for the single-shot VMEM-resident kernel; "
            "see TODO(synk) for the batch-tiled BatchNorm variant")

    flops = 2 * B_pad * (L_pad * 128 + 128 * 256 + 256 * 512 + 512 * OUT_pad)
    bytes_accessed = (B_pad * L_pad) * 2 + wgt_bytes + 4 * slab_w * 4 \
        + B_pad * OUT_pad * 4
    transcendentals = B_pad * OUT_pad + (128 + 256 + 512)

    args = (z_bf, w1_bf, w2_bf, w3_bf, w4_bf, bias_slab)

    out = pl.pallas_call(
        functools.partial(_generator_kernel, valid_b=B),
        out_shape=jax.ShapeDtypeStruct((B_pad, OUT_pad), jnp.float32),
        grid=(1,),
        in_specs=[_full_spec(a.shape) for a in args],
        out_specs=pl.BlockSpec((B_pad, OUT_pad), lambda i: (0, 0)),
        compiler_params=pltpu.CompilerParams(
            dimension_semantics=("arbitrary",),
            vmem_limit_bytes=48 * 1024 * 1024),
        cost_estimate=pl.CostEstimate(
            flops=int(flops),
            transcendentals=int(transcendentals),
            bytes_accessed=int(bytes_accessed)),
    )(*args)

    return out[:B, :out_dim]


def init_params(key, latent_dim, output_dim):
    """Deterministic init mimicking PyTorch Linear default U(-1/sqrt(fan_in), ...).

    gamma/beta use non-trivial values (PyTorch default is ones/zeros) so the
    BN-affine folding path is actually exercised by the correctness check."""
    dims = [latent_dim, 128, 256, 512, output_dim]
    params = {}
    for i in range(4):
        fan_in, fan_out = dims[i], dims[i + 1]
        key, kw, kb = jax.random.split(key, 3)
        bound = 1.0 / (fan_in ** 0.5)
        params[f"w{i+1}"] = jax.random.uniform(
            kw, (fan_in, fan_out), jnp.float32, -bound, bound)
        params[f"b{i+1}"] = jax.random.uniform(
            kb, (1, fan_out), jnp.float32, -bound, bound)
        if i < 3:  # BatchNorm affine params after the first three linears
            key, kg, kbe = jax.random.split(key, 3)
            params[f"g{i+1}"] = jax.random.uniform(
                kg, (1, fan_out), jnp.float32, 0.5, 1.5)
            params[f"be{i+1}"] = 0.1 * jax.random.normal(
                kbe, (1, fan_out), jnp.float32)
    return params


def generator_reference(z, params):
    """Pure-JAX f32 reference (unfolded params, PyTorch training semantics)."""
    h = z.astype(jnp.float32)
    for i in range(1, 4):
        h = h @ params[f"w{i}"] + params[f"b{i}"]
        h = jnp.where(h > 0, h, LEAK * h)
        mean = jnp.mean(h, axis=0, keepdims=True)
        var = jnp.mean((h - mean) ** 2, axis=0, keepdims=True)
        h = (h - mean) * jax.lax.rsqrt(var + EPS) * params[f"g{i}"] \
            + params[f"be{i}"]
    h = h @ params["w4"] + params["b4"]
    return jnp.tanh(h)


if __name__ == "__main__":
    latent_dim = 32
    output_dim = 64
    batch = 8

    key = jax.random.PRNGKey(0)
    key, kz = jax.random.split(key)
    z = jax.random.normal(kz, (batch, latent_dim), jnp.float32)
    params = init_params(key, latent_dim, output_dim)

    out = jax.block_until_ready(generator_forward(z, params))
    ref = generator_reference(z, params)

    assert out.shape == (batch, output_dim)
    # bf16 matmul operands / f32 accumulation vs f32 reference -> relaxed tol.
    max_err = float(jnp.max(jnp.abs(out - ref)))
    assert jnp.allclose(out, ref, atol=2e-2, rtol=2e-2), (
        f"mismatch vs reference, max abs err {max_err}")

    print("KERNEL_OK")
</pallas_src>

<mosaic_0001>
module attributes {stable_mosaic.version = 11 : i64} {
  func.func @_generator_kernel(%arg0: i32, %arg1: memref<8x128xbf16, #tpu.memory_space<vmem>>, %arg2: memref<128x128xbf16, #tpu.memory_space<vmem>>, %arg3: memref<128x256xbf16, #tpu.memory_space<vmem>>, %arg4: memref<256x512xbf16, #tpu.memory_space<vmem>>, %arg5: memref<512x128xbf16, #tpu.memory_space<vmem>>, %arg6: memref<4x512xf32, #tpu.memory_space<vmem>>, %arg7: memref<8x128xf32, #tpu.memory_space<vmem>>) attributes {dimension_semantics = [#tpu.dimension_semantics<arbitrary>], iteration_bounds = array<i64: 1>, scalar_prefetch = 0 : i64, scratch_operands = 0 : i64, tpu.core_type = #tpu.core_type<tc>, window_params = [{pipeline_mode = #tpu.pipeline_mode<synchronous>, transform_indices = @transform_0, window_bounds = array<i64: 8, 128>}, {pipeline_mode = #tpu.pipeline_mode<synchronous>, transform_indices = @transform_1, window_bounds = array<i64: 128, 128>}, {pipeline_mode = #tpu.pipeline_mode<synchronous>, transform_indices = @transform_2, window_bounds = array<i64: 128, 256>}, {pipeline_mode = #tpu.pipeline_mode<synchronous>, transform_indices = @transform_3, window_bounds = array<i64: 256, 512>}, {pipeline_mode = #tpu.pipeline_mode<synchronous>, transform_indices = @transform_4, window_bounds = array<i64: 512, 128>}, {pipeline_mode = #tpu.pipeline_mode<synchronous>, transform_indices = @transform_5, window_bounds = array<i64: 4, 512>}, {pipeline_mode = #tpu.pipeline_mode<synchronous>, transform_indices = @transform_6, window_bounds = array<i64: 8, 128>}]} {
    %c0 = arith.constant 0 : index
    %c0_0 = arith.constant 0 : index
    %0 = vector.load %arg1[%c0, %c0_0] : memref<8x128xbf16, #tpu.memory_space<vmem>>, vector<8x128xbf16>
    %c0_1 = arith.constant 0 : index
    %c0_2 = arith.constant 0 : index
    %1 = vector.load %arg2[%c0_1, %c0_2] : memref<128x128xbf16, #tpu.memory_space<vmem>>, vector<128x128xbf16>
    %cst = arith.constant dense<0.000000e+00> : vector<8x128xf32>
    %2 = tpu.matmul %0, %1, %cst {dimension_numbers = #tpu.dot_dimension_numbers<[1], [0], [0], [1], [0, 0, 1, 1], [], []>} : vector<8x128xbf16>, vector<128x128xbf16>, vector<8x128xf32> -> vector<8x128xf32>
    %c0_3 = arith.constant 0 : index
    %c0_4 = arith.constant 0 : index
    %3 = vector.load %arg6[%c0_3, %c0_4] : memref<4x512xf32, #tpu.memory_space<vmem>>, vector<1x128xf32>
    %4 = vector.broadcast %3 : vector<1x128xf32> to vector<8x128xf32>
    %5 = arith.addf %2, %4 : vector<8x128xf32>
    %cst_5 = arith.constant 0.000000e+00 : f32
    %6 = vector.broadcast %cst_5 : f32 to vector<8x128xf32>
    %7 = arith.cmpf ogt, %5, %6 : vector<8x128xf32>
    %cst_6 = arith.constant 0.00999999977 : f32
    %8 = vector.broadcast %cst_6 : f32 to vector<8x128xf32>
    %9 = arith.mulf %8, %5 : vector<8x128xf32>
    %10 = arith.select %7, %5, %9 : vector<8x128xi1>, vector<8x128xf32>
    %cst_7 = arith.constant dense<0.000000e+00> : vector<128xf32>
    %11 = vector.multi_reduction <add>, %10, %cst_7 [0] : vector<8x128xf32> to vector<128xf32>
    %12 = vector.shape_cast %11 : vector<128xf32> to vector<1x128xf32>
    %cst_8 = arith.constant 8.000000e+00 : f32
    %13 = vector.broadcast %cst_8 : f32 to vector<1x128xf32>
    %14 = arith.divf %12, %13 : vector<1x128xf32>
    %15 = vector.broadcast %14 : vector<1x128xf32> to vector<8x128xf32>
    %16 = arith.subf %10, %15 : vector<8x128xf32>
    %17 = arith.mulf %16, %16 : vector<8x128xf32>
    %cst_9 = arith.constant dense<0.000000e+00> : vector<128xf32>
    %18 = vector.multi_reduction <add>, %17, %cst_9 [0] : vector<8x128xf32> to vector<128xf32>
    %19 = vector.shape_cast %18 : vector<128xf32> to vector<1x128xf32>
    %cst_10 = arith.constant 8.000000e+00 : f32
    %20 = vector.broadcast %cst_10 : f32 to vector<1x128xf32>
    %21 = arith.divf %19, %20 : vector<1x128xf32>
    %22 = vector.broadcast %14 : vector<1x128xf32> to vector<8x128xf32>
    %23 = arith.subf %10, %22 : vector<8x128xf32>
    %cst_11 = arith.constant 9.99999974E-6 : f32
    %24 = vector.broadcast %cst_11 : f32 to vector<1x128xf32>
    %25 = arith.addf %21, %24 : vector<1x128xf32>
    %26 = math.rsqrt %25 : vector<1x128xf32>
    %27 = vector.broadcast %26 : vector<1x128xf32> to vector<8x128xf32>
    %28 = arith.mulf %23, %27 : vector<8x128xf32>
    %29 = arith.truncf %28 : vector<8x128xf32> to vector<8x128xbf16>
    %c0_12 = arith.constant 0 : index
    %c0_13 = arith.constant 0 : index
    %30 = vector.load %arg3[%c0_12, %c0_13] : memref<128x256xbf16, #tpu.memory_space<vmem>>, vector<128x256xbf16>
    %cst_14 = arith.constant dense<0.000000e+00> : vector<8x256xf32>
    %31 = tpu.matmul %29, %30, %cst_14 {dimension_numbers = #tpu.dot_dimension_numbers<[1], [0], [0], [1], [0, 0, 1, 1], [], []>} : vector<8x128xbf16>, vector<128x256xbf16>, vector<8x256xf32> -> vector<8x256xf32>
    %c1 = arith.constant 1 : index
    %c0_15 = arith.constant 0 : index
    %32 = vector.load %arg6[%c1, %c0_15] : memref<4x512xf32, #tpu.memory_space<vmem>>, vector<1x256xf32>
    %33 = vector.broadcast %32 : vector<1x256xf32> to vector<8x256xf32>
    %34 = arith.addf %31, %33 : vector<8x256xf32>
    %cst_16 = arith.constant 0.000000e+00 : f32
    %35 = vector.broadcast %cst_16 : f32 to vector<8x256xf32>
    %36 = arith.cmpf ogt, %34, %35 : vector<8x256xf32>
    %cst_17 = arith.constant 0.00999999977 : f32
    %37 = vector.broadcast %cst_17 : f32 to vector<8x256xf32>
    %38 = arith.mulf %37, %34 : vector<8x256xf32>
    %39 = arith.select %36, %34, %38 : vector<8x256xi1>, vector<8x256xf32>
    %cst_18 = arith.constant dense<0.000000e+00> : vector<256xf32>
    %40 = vector.multi_reduction <add>, %39, %cst_18 [0] : vector<8x256xf32> to vector<256xf32>
    %41 = vector.shape_cast %40 : vector<256xf32> to vector<1x256xf32>
    %cst_19 = arith.constant 8.000000e+00 : f32
    %42 = vector.broadcast %cst_19 : f32 to vector<1x256xf32>
    %43 = arith.divf %41, %42 : vector<1x256xf32>
    %44 = vector.broadcast %43 : vector<1x256xf32> to vector<8x256xf32>
    %45 = arith.subf %39, %44 : vector<8x256xf32>
    %46 = arith.mulf %45, %45 : vector<8x256xf32>
    %cst_20 = arith.constant dense<0.000000e+00> : vector<256xf32>
    %47 = vector.multi_reduction <add>, %46, %cst_20 [0] : vector<8x256xf32> to vector<256xf32>
    %48 = vector.shape_cast %47 : vector<256xf32> to vector<1x256xf32>
    %cst_21 = arith.constant 8.000000e+00 : f32
    %49 = vector.broadcast %cst_21 : f32 to vector<1x256xf32>
    %50 = arith.divf %48, %49 : vector<1x256xf32>
    %51 = vector.broadcast %43 : vector<1x256xf32> to vector<8x256xf32>
    %52 = arith.subf %39, %51 : vector<8x256xf32>
    %cst_22 = arith.constant 9.99999974E-6 : f32
    %53 = vector.broadcast %cst_22 : f32 to vector<1x256xf32>
    %54 = arith.addf %50, %53 : vector<1x256xf32>
    %55 = math.rsqrt %54 : vector<1x256xf32>
    %56 = vector.broadcast %55 : vector<1x256xf32> to vector<8x256xf32>
    %57 = arith.mulf %52, %56 : vector<8x256xf32>
    %58 = arith.truncf %57 : vector<8x256xf32> to vector<8x256xbf16>
    %c0_23 = arith.constant 0 : index
    %c0_24 = arith.constant 0 : index
    %59 = vector.load %arg4[%c0_23, %c0_24] : memref<256x512xbf16, #tpu.memory_space<vmem>>, vector<256x512xbf16>
    %cst_25 = arith.constant dense<0.000000e+00> : vector<8x512xf32>
    %60 = tpu.matmul %58, %59, %cst_25 {dimension_numbers = #tpu.dot_dimension_numbers<[1], [0], [0], [1], [0, 0, 1, 1], [], []>} : vector<8x256xbf16>, vector<256x512xbf16>, vector<8x512xf32> -> vector<8x512xf32>
    %c2 = arith.constant 2 : index
    %c0_26 = arith.constant 0 : index
    %61 = vector.load %arg6[%c2, %c0_26] : memref<4x512xf32, #tpu.memory_space<vmem>>, vector<1x512xf32>
    %62 = vector.broadcast %61 : vector<1x512xf32> to vector<8x512xf32>
    %63 = arith.addf %60, %62 : vector<8x512xf32>
    %cst_27 = arith.constant 0.000000e+00 : f32
    %64 = vector.broadcast %cst_27 : f32 to vector<8x512xf32>
    %65 = arith.cmpf ogt, %63, %64 : vector<8x512xf32>
    %cst_28 = arith.constant 0.00999999977 : f32
    %66 = vector.broadcast %cst_28 : f32 to vector<8x512xf32>
    %67 = arith.mulf %66, %63 : vector<8x512xf32>
    %68 = arith.select %65, %63, %67 : vector<8x512xi1>, vector<8x512xf32>
    %cst_29 = arith.constant dense<0.000000e+00> : vector<512xf32>
    %69 = vector.multi_reduction <add>, %68, %cst_29 [0] : vector<8x512xf32> to vector<512xf32>
    %70 = vector.shape_cast %69 : vector<512xf32> to vector<1x512xf32>
    %cst_30 = arith.constant 8.000000e+00 : f32
    %71 = vector.broadcast %cst_30 : f32 to vector<1x512xf32>
    %72 = arith.divf %70, %71 : vector<1x512xf32>
    %73 = vector.broadcast %72 : vector<1x512xf32> to vector<8x512xf32>
    %74 = arith.subf %68, %73 : vector<8x512xf32>
    %75 = arith.mulf %74, %74 : vector<8x512xf32>
    %cst_31 = arith.constant dense<0.000000e+00> : vector<512xf32>
    %76 = vector.multi_reduction <add>, %75, %cst_31 [0] : vector<8x512xf32> to vector<512xf32>
    %77 = vector.shape_cast %76 : vector<512xf32> to vector<1x512xf32>
    %cst_32 = arith.constant 8.000000e+00 : f32
    %78 = vector.broadcast %cst_32 : f32 to vector<1x512xf32>
    %79 = arith.divf %77, %78 : vector<1x512xf32>
    %80 = vector.broadcast %72 : vector<1x512xf32> to vector<8x512xf32>
    %81 = arith.subf %68, %80 : vector<8x512xf32>
    %cst_33 = arith.constant 9.99999974E-6 : f32
    %82 = vector.broadcast %cst_33 : f32 to vector<1x512xf32>
    %83 = arith.addf %79, %82 : vector<1x512xf32>
    %84 = math.rsqrt %83 : vector<1x512xf32>
    %85 = vector.broadcast %84 : vector<1x512xf32> to vector<8x512xf32>
    %86 = arith.mulf %81, %85 : vector<8x512xf32>
    %87 = arith.truncf %86 : vector<8x512xf32> to vector<8x512xbf16>
    %c0_34 = arith.constant 0 : index
    %c0_35 = arith.constant 0 : index
    %88 = vector.load %arg5[%c0_34, %c0_35] : memref<512x128xbf16, #tpu.memory_space<vmem>>, vector<512x128xbf16>
    %cst_36 = arith.constant dense<0.000000e+00> : vector<8x128xf32>
    %89 = tpu.matmul %87, %88, %cst_36 {dimension_numbers = #tpu.dot_dimension_numbers<[1], [0], [0], [1], [0, 0, 1, 1], [], []>} : vector<8x512xbf16>, vector<512x128xbf16>, vector<8x128xf32> -> vector<8x128xf32>
    %c3 = arith.constant 3 : index
    %c0_37 = arith.constant 0 : index
    %90 = vector.load %arg6[%c3, %c0_37] : memref<4x512xf32, #tpu.memory_space<vmem>>, vector<1x128xf32>
    %91 = vector.broadcast %90 : vector<1x128xf32> to vector<8x128xf32>
    %92 = arith.addf %89, %91 : vector<8x128xf32>
    %93 = math.tanh %92 : vector<8x128xf32>
    %c0_38 = arith.constant 0 : index
    %c0_39 = arith.constant 0 : index
    %94 = vector.load %arg7[%c0_38, %c0_39] : memref<8x128xf32, #tpu.memory_space<vmem>>, vector<8x128xf32>
    tpu.vector_store %arg7[%c0_38, %c0_39], %93 {strides = array<i32>} : memref<8x128xf32, #tpu.memory_space<vmem>>, vector<8x128xf32>,
    return
  }
  func.func @transform_0(%arg0: i32) -> (i32, i32) {
    %c0_i32 = arith.constant 0 : i32
    %c0_i32_0 = arith.constant 0 : i32
    %c0_i32_1 = arith.constant 0 : i32
    return %c0_i32, %c0_i32_0 : i32, i32
  }
  func.func @transform_1(%arg0: i32) -> (i32, i32) {
    %c0_i32 = arith.constant 0 : i32
    %c0_i32_0 = arith.constant 0 : i32
    %c0_i32_1 = arith.constant 0 : i32
    return %c0_i32, %c0_i32_0 : i32, i32
  }
  func.func @transform_2(%arg0: i32) -> (i32, i32) {
    %c0_i32 = arith.constant 0 : i32
    %c0_i32_0 = arith.constant 0 : i32
    %c0_i32_1 = arith.constant 0 : i32
    return %c0_i32, %c0_i32_0 : i32, i32
  }
  func.func @transform_3(%arg0: i32) -> (i32, i32) {
    %c0_i32 = arith.constant 0 : i32
    %c0_i32_0 = arith.constant 0 : i32
    %c0_i32_1 = arith.constant 0 : i32
    return %c0_i32, %c0_i32_0 : i32, i32
  }
  func.func @transform_4(%arg0: i32) -> (i32, i32) {
    %c0_i32 = arith.constant 0 : i32
    %c0_i32_0 = arith.constant 0 : i32
    %c0_i32_1 = arith.constant 0 : i32
    return %c0_i32, %c0_i32_0 : i32, i32
  }
  func.func @transform_5(%arg0: i32) -> (i32, i32) {
    %c0_i32 = arith.constant 0 : i32
    %c0_i32_0 = arith.constant 0 : i32
    %c0_i32_1 = arith.constant 0 : i32
    return %c0_i32, %c0_i32_0 : i32, i32
  }
  func.func @transform_6(%arg0: i32) -> (i32, i32) {
    %c0_i32 = arith.constant 0 : i32
    %c0_i32_0 = arith.constant 0 : i32
    %c0_i32_1 = arith.constant 0 : i32
    return %c0_i32, %c0_i32_0 : i32, i32
  }
}

</mosaic_0001>

<llo_original>
// kernel: generator_forward.1
$region0: #{generator_forward.1}
  #allocation0 [shape = 'u32[]', space=smem, size = 0x4, offset = 0x4, fixed_abs, tag = 'smem constant byte address 0x4 - core index']
  #allocation1 [shape = 'u32[72,128]{1,0:T(1,128)}', space=vmem, size = 0x9000, scoped, tag = 'internal scratch']
  %s0 = inlined_call_operand.vmem [shape: bf16[8,128], index: 0, kind: input, shape index: {}]
  %s1 = inlined_call_operand.vmem [shape: bf16[128,128], index: 1, kind: input, shape index: {}]
  %s2 = inlined_call_operand.vmem [shape: bf16[128,256], index: 2, kind: input, shape index: {}]
  %s3 = inlined_call_operand.vmem [shape: bf16[256,512], index: 3, kind: input, shape index: {}]
  %s4 = inlined_call_operand.vmem [shape: bf16[512,128], index: 4, kind: input, shape index: {}]
  %s5 = inlined_call_operand.vmem [shape: f32[4,512], index: 5, kind: input, shape index: {}]
  %s6 = inlined_call_operand.hbm [shape: f32[8,128], index: 6, kind: output, shape index: {}]
  %s7 = sld [smem:[#allocation0]]
  $region34: #{generator_forward.1} parent=0
    _
  %s9 = ssub.s32 1, %s7
  %s10 = scalar_select 0, %s9, %s7
  $region1: #{generator_forward.1} parent=0
    #allocation2 [shape = 'u8[4096]{0}', space=vmem, size = 0x1000, scoped, tag = 'output window, operand 0, single buffered']
    #allocation3 [shape = 's32[1]{0}', space=sflag, size = 0x4, scoped, tag = 'scoped memory for generator_forward.1']
    %11 = vsyncpa [#allocation3], 0
    // Predicated region
    $region2: #{generator_forward.1} parent=1 // pred_check
      _
    $region3: #{generator_forward.1} parent=1 // pred_check_branch
      %13 = sbr.rel (0) target = $region5
    $region4: #{generator_forward.1} parent=1 // pred_region
      _
    $region5: #{generator_forward.1} parent=1 // pred_fallthru
      _
    // Predicated region
    $region6: #{generator_forward.1} parent=1 // pred_check
      _
    $region7: #{generator_forward.1} parent=1 // pred_check_branch
      %15 = sbr.rel (0) target = $region9
    $region8: #{generator_forward.1} parent=1 // pred_region
      _
    $region9: #{generator_forward.1} parent=1 // pred_fallthru
      _
    // Predicated region
    $region10: #{generator_forward.1} parent=1 // pred_check
      _
    $region11: #{generator_forward.1} parent=1 // pred_check_branch
      %17 = sbr.rel (0) target = $region13
    $region12: #{generator_forward.1} parent=1 // pred_region
      _
    $region13: #{generator_forward.1} parent=1 // pred_fallthru
      _
    // Predicated region
    $region14: #{generator_forward.1} parent=1 // pred_check
      _
    $region15: #{generator_forward.1} parent=1 // pred_check_branch
      %19 = sbr.rel (0) target = $region17
    $region16: #{generator_forward.1} parent=1 // pred_region
      _
    $region17: #{generator_forward.1} parent=1 // pred_fallthru
      _
    // Predicated region
    $region18: #{generator_forward.1} parent=1 // pred_check
      _
    $region19: #{generator_forward.1} parent=1 // pred_check_branch
      %21 = sbr.rel (0) target = $region21
    $region20: #{generator_forward.1} parent=1 // pred_region
      _
    $region21: #{generator_forward.1} parent=1 // pred_fallthru
      _
    // Predicated region
    $region22: #{generator_forward.1} parent=1 // pred_check
      _
    $region23: #{generator_forward.1} parent=1 // pred_check_branch
      %23 = sbr.rel (0) target = $region25
    $region24: #{generator_forward.1} parent=1 // pred_region
      _
    $region25: #{generator_forward.1} parent=1 // pred_fallthru
      _
    %v24 = vld [vmem:[%s0] sm:$0xf]
    %v25 = vld [vmem:[%s1] sm:$0xf]
    %v26 = vld [vmem:[%s1 + $0x4] sm:$0xf]
    %v27 = vld [vmem:[%s1 + $0x8] sm:$0xf]
    %v28 = vld [vmem:[%s1 + $0xc] sm:$0xf]
    %v29 = vld [vmem:[%s1 + $0x10] sm:$0xf]
    %v30 = vld [vmem:[%s1 + $0x14] sm:$0xf]
    %v31 = vld [vmem:[%s1 + $0x18] sm:$0xf]
    %v32 = vld [vmem:[%s1 + $0x1c] sm:$0xf]
    %v33 = vld [vmem:[%s1 + $0x20] sm:$0xf]
    %v34 = vld [vmem:[%s1 + $0x24] sm:$0xf]
    %v35 = vld [vmem:[%s1 + $0x28] sm:$0xf]
    %v36 = vld [vmem:[%s1 + $0x2c] sm:$0xf]
    %v37 = vld [vmem:[%s1 + $0x30] sm:$0xf]
    %v38 = vld [vmem:[%s1 + $0x34] sm:$0xf]
    %v39 = vld [vmem:[%s1 + $0x38] sm:$0xf]
    %v40 = vld [vmem:[%s1 + $0x3c] sm:$0xf]
    %v41 = vld [vmem:[%s5] sm:$0x1]
    %v42 = vperm.slane %v41, 0
    %v59 = vunpack.c.l.b16 %v25
    %v60 = vunpack.c.l.b16 %v26
    %v61 = vunpack.c.l.b16 %v27
    %v62 = vunpack.c.l.b16 %v28
    %v63 = vunpack.c.l.b16 %v29
    %v64 = vunpack.c.l.b16 %v30
    %v65 = vunpack.c.l.b16 %v31
    %v66 = vunpack.c.l.b16 %v32
    %v67 = vunpack.c.l.b16 %v33
    %v68 = vunpack.c.l.b16 %v34
    %v69 = vunpack.c.l.b16 %v35
    %v70 = vunpack.c.l.b16 %v36
    %v71 = vunpack.c.l.b16 %v37
    %v72 = vunpack.c.l.b16 %v38
    %v73 = vunpack.c.l.b16 %v39
    %v74 = vunpack.c.l.b16 %v40
    %v75 = vpack.c.b16 %v60, %v59
    %v76 = vpack.c.b16 %v62, %v61
    %v77 = vpack.c.b16 %v64, %v63
    %v78 = vpack.c.b16 %v66, %v65
    %v79 = vpack.c.b16 %v68, %v67
    %v80 = vpack.c.b16 %v70, %v69
    %v81 = vpack.c.b16 %v72, %v71
    %v82 = vpack.c.b16 %v74, %v73
    %91 = vmatpush.bf16.msra.mxu0 %v82
    %92 = vmatpush.bf16.msra.mxu0 %v81
    %93 = vmatpush.bf16.msra.mxu0 %v80
    %94 = vmatpush.bf16.msra.mxu0 %v79
    %95 = vmatpush.bf16.msra.mxu0 %v78
    %96 = vmatpush.bf16.msra.mxu0 %v77
    %97 = vmatpush.bf16.msra.mxu0 %v76
    %98 = vmatpush.bf16.msra.mxu0 %v75
    %99 = vmatmul.bf16.gmra.mxu0 %v24
    %v100 = vpop.f32.mrf.mxu0
    %v101 = vadd.f32 %v42, %v100
    %v102 = vpop.f32.mrf.mxu0
    %103 = vdwg.mxu0
    %vm104 = vcmp.gt.f32.partialorder %v101, 0.0
    %v105 = vmul.f32 %v101, 0.01
    %v106 = vsel %vm104, %v101, %v105
    %v107 = vrot.slane %v106, 4
    %v108 = vadd.f32 %v106, %v107
    %v109 = vrot.slane %v108, 2
    %v110 = vadd.f32 %v108, %v109
    %v111 = vrot.slane %v110, 1
    %v112 = vadd.f32 %v110, %v111
    %v113 = vrcp.pop 8.0
    %v114 = vmul.f32 8.0, %v113
    %v115 = vsub.f32 1.0, %v114
    %v116 = vmul.f32 %v113, %v115
    %v117 = vadd.f32 %v113, %v116
    %vm118 = vweird.f32 %v113
    %v119 = vsel %vm118, %v113, %v117
    %v120 = vmul.f32 %v112, %v119
    %v121 = vsub.f32 %v106, %v120
    %v122 = vmul.f32 %v121, %v121
    %v123 = vrot.slane %v122, 4
    %v124 = vadd.f32 %v122, %v123
    %v125 = vrot.slane %v124, 2
    %v126 = vadd.f32 %v124, %v125
    %v127 = vrot.slane %v126, 1
    %v128 = vadd.f32 %v126, %v127
    %v129 = vmul.f32 %v128, %v119
    %v130 = vadd.f32 %v129, 1e-05
    %v131 = vrsqrt.pop %v130
    %v132 = vmul.f32 %v131, %v130
    %v133 = vmul.f32 %v132, %v131
    %v134 = vmul.f32 0.5, %v133
    %v135 = vsub.f32 1.5, %v134
    %v136 = vmul.f32 %v131, %v135
    %vm137 = vweird.f32 %v130
    %vm138 = vweird.f32 %v131
    %vm139 = vmor %vm137, %vm138
    %v140 = vsel %vm139, %v131, %v136
    %v141 = vmul.f32 %v121, %v140
    %v142 = vpack.c.bf16 %v141, %v141
    %v143 = vld [vmem:[%s2] sm:$0xff]
    %v144 = vld [vmem:[%s2 + $0x8] sm:$0xff]
    %v145 = vld [vmem:[%s2 + $0x10] sm:$0xff]
    %v146 = vld [vmem:[%s2 + $0x18] sm:$0xff]
    %v147 = vld [vmem:[%s2 + $0x20] sm:$0xff]
    %v148 = vld [vmem:[%s2 + $0x28] sm:$0xff]
    %v149 = vld [vmem:[%s2 + $0x30] sm:$0xff]
    %v150 = vld [vmem:[%s2 + $0x38] sm:$0xff]
    %v151 = vld [vmem:[%s2 + $0x40] sm:$0xff]
    %v152 = vld [vmem:[%s2 + $0x48] sm:$0xff]
    %v153 = vld [vmem:[%s2 + $0x50] sm:$0xff]
    %v154 = vld [vmem:[%s2 + $0x58] sm:$0xff]
    %v155 = vld [vmem:[%s2 + $0x60] sm:$0xff]
    %v156 = vld [vmem:[%s2 + $0x68] sm:$0xff]
    %v157 = vld [vmem:[%s2 + $0x70] sm:$0xff]
    %v158 = vld [vmem:[%s2 + $0x78] sm:$0xff]
    %s159 = scalar_lea.vmem %s5, 1
    %v160 = vld [vmem:[%s159] ss:$4 sm:$0x3]
    %v162 = vperm.slane %v160, 0
    %v163 = vperm.slane %v160, 1
    %v182 = vunpack.c.l.b16 %v143
    %v183 = vunpack.c.h.b16 %v143
    %v184 = vunpack.c.l.b16 %v144
    %v185 = vunpack.c.h.b16 %v144
    %v186 = vunpack.c.l.b16 %v145
    %v187 = vunpack.c.h.b16 %v145
    %v188 = vunpack.c.l.b16 %v146
    %v189 = vunpack.c.h.b16 %v146
    %v190 = vunpack.c.l.b16 %v147
    %v191 = vunpack.c.h.b16 %v147
    %v192 = vunpack.c.l.b16 %v148
    %v193 = vunpack.c.h.b16 %v148
    %v194 = vunpack.c.l.b16 %v149
    %v195 = vunpack.c.h.b16 %v149
    %v196 = vunpack.c.l.b16 %v150
    %v197 = vunpack.c.h.b16 %v150
    %v198 = vunpack.c.l.b16 %v151
    %v199 = vunpack.c.h.b16 %v151
    %v200 = vunpack.c.l.b16 %v152
    %v201 = vunpack.c.h.b16 %v152
    %v202 = vunpack.c.l.b16 %v153
    %v203 = vunpack.c.h.b16 %v153
    %v204 = vunpack.c.l.b16 %v154
    %v205 = vunpack.c.h.b16 %v154
    %v206 = vunpack.c.l.b16 %v155
    %v207 = vunpack.c.h.b16 %v155
    %v208 = vunpack.c.l.b16 %v156
    %v209 = vunpack.c.h.b16 %v156
    %v210 = vunpack.c.l.b16 %v157
    %v211 = vunpack.c.h.b16 %v157
    %v212 = vunpack.c.l.b16 %v158
    %v213 = vunpack.c.h.b16 %v158
    %v214 = vpack.c.b16 %v184, %v182
    %v215 = vpack.c.b16 %v185, %v183
    %v216 = vpack.c.b16 %v188, %v186
    %v217 = vpack.c.b16 %v189, %v187
    %v218 = vpack.c.b16 %v192, %v190
    %v219 = vpack.c.b16 %v193, %v191
    %v220 = vpack.c.b16 %v196, %v194
    %v221 = vpack.c.b16 %v197, %v195
    %v222 = vpack.c.b16 %v200, %v198
    %v223 = vpack.c.b16 %v201, %v199
    %v224 = vpack.c.b16 %v204, %v202
    %v225 = vpack.c.b16 %v205, %v203
    %v226 = vpack.c.b16 %v208, %v206
    %v227 = vpack.c.b16 %v209, %v207
    %v228 = vpack.c.b16 %v212, %v210
    %v229 = vpack.c.b16 %v213, %v211
    %246 = vmatpush.bf16.msra.mxu0 %v228
    %247 = vmatpush.bf16.msra.mxu0 %v226
    %248 = vmatpush.bf16.msra.mxu0 %v224
    %249 = vmatpush.bf16.msra.mxu0 %v222
    %250 = vmatpush.bf16.msra.mxu0 %v220
    %251 = vmatpush.bf16.msra.mxu0 %v218
    %252 = vmatpush.bf16.msra.mxu0 %v216
    %253 = vmatpush.bf16.msra.mxu0 %v214
    %254 = vmatmul.bf16.gmra.mxu0 %v142
    %v255 = vpop.f32.mrf.mxu0
    %v256 = vadd.f32 %v162, %v255
    %v257 = vpop.f32.mrf.mxu0
    %258 = vdwg.mxu0
    %259 = vmatpush.bf16.msra.mxu0 %v229
    %260 = vmatpush.bf16.msra.mxu0 %v227
    %261 = vmatpush.bf16.msra.mxu0 %v225
    %262 = vmatpush.bf16.msra.mxu0 %v223
    %263 = vmatpush.bf16.msra.mxu0 %v221
    %264 = vmatpush.bf16.msra.mxu0 %v219
    %265 = vmatpush.bf16.msra.mxu0 %v217
    %266 = vmatpush.bf16.msra.mxu0 %v215
    %267 = vmatmul.bf16.gmra.mxu0 %v142
    %v268 = vpop.f32.mrf.mxu0
    %v269 = vadd.f32 %v163, %v268
    %v270 = vpop.f32.mrf.mxu0
    %271 = vdwg.mxu0
    %vm272 = vcmp.gt.f32.partialorder %v256, 0.0
    %vm273 = vcmp.gt.f32.partialorder %v269, 0.0
    %v274 = vmul.f32 %v256, 0.01
    %v275 = vmul.f32 %v269, 0.01
    %v276 = vsel %vm272, %v256, %v274
    %v277 = vsel %vm273, %v269, %v275
    %v278 = vrot.slane %v276, 4
    %v279 = vadd.f32 %v276, %v278
    %v280 = vrot.slane %v279, 2
    %v281 = vadd.f32 %v279, %v280
    %v282 = vrot.slane %v281, 1
    %v283 = vadd.f32 %v281, %v282
    %v284 = vrot.slane %v277, 4
    %v285 = vadd.f32 %v277, %v284
    %v286 = vrot.slane %v285, 2
    %v287 = vadd.f32 %v285, %v286
    %v288 = vrot.slane %v287, 1
    %v289 = vadd.f32 %v287, %v288
    %v290 = vmul.f32 %v283, %v119
    %v291 = vmul.f32 %v289, %v119
    %v292 = vsub.f32 %v276, %v290
    %v293 = vsub.f32 %v277, %v291
    %v294 = vmul.f32 %v292, %v292
    %v295 = vmul.f32 %v293, %v293
    %v296 = vrot.slane %v294, 4
    %v297 = vadd.f32 %v294, %v296
    %v298 = vrot.slane %v297, 2
    %v299 = vadd.f32 %v297, %v298
    %v300 = vrot.slane %v299, 1
    %v301 = vadd.f32 %v299, %v300
    %v302 = vrot.slane %v295, 4
    %v303 = vadd.f32 %v295, %v302
    %v304 = vrot.slane %v303, 2
    %v305 = vadd.f32 %v303, %v304
    %v306 = vrot.slane %v305, 1
    %v307 = vadd.f32 %v305, %v306
    %v308 = vmul.f32 %v301, %v119
    %v309 = vmul.f32 %v307, %v119
    %v310 = vadd.f32 %v308, 1e-05
    %v311 = vadd.f32 %v309, 1e-05
    %v312 = vrsqrt.pop %v310
    %v313 = vmul.f32 %v312, %v310
    %v314 = vmul.f32 %v313, %v312
    %v315 = vmul.f32 0.5, %v314
    %v316 = vsub.f32 1.5, %v315
    %v317 = vmul.f32 %v312, %v316
    %vm318 = vweird.f32 %v310
    %vm319 = vweird.f32 %v312
    %vm320 = vmor %vm318, %vm319
    %v321 = vsel %vm320, %v312, %v317
    %v322 = vrsqrt.pop %v311
    %v323 = vmul.f32 %v322, %v311
    %v324 = vmul.f32 %v323, %v322
    %v325 = vmul.f32 0.5, %v324
    %v326 = vsub.f32 1.5, %v325
    %v327 = vmul.f32 %v322, %v326
    %vm328 = vweird.f32 %v311
    %vm329 = vweird.f32 %v322
    %vm330 = vmor %vm328, %vm329
    %v331 = vsel %vm330, %v322, %v327
    %v332 = vmul.f32 %v292, %v321
    %v333 = vmul.f32 %v293, %v331
    %v334 = vpack.c.bf16 %v332, %v332
    %v335 = vpack.c.bf16 %v333, %v333
    %v336 = vld [vmem:[%s3] sm:$0xff]
    %v337 = vld [vmem:[%s3 + $0x8] sm:$0xff]
    %v338 = vld [vmem:[%s3 + $0x10] sm:$0xff]
    %v339 = vld [vmem:[%s3 + $0x18] sm:$0xff]
    %v340 = vld [vmem:[%s3 + $0x20] sm:$0xff]
    %v341 = vld [vmem:[%s3 + $0x28] sm:$0xff]
    %v342 = vld [vmem:[%s3 + $0x30] sm:$0xff]
    %v343 = vld [vmem:[%s3 + $0x38] sm:$0xff]
    %v344 = vld [vmem:[%s3 + $0x40] sm:$0xff]
    %v345 = vld [vmem:[%s3 + $0x48] sm:$0xff]
    %v346 = vld [vmem:[%s3 + $0x50] sm:$0xff]
    %v347 = vld [vmem:[%s3 + $0x58] sm:$0xff]
    %v348 = vld [vmem:[%s3 + $0x60] sm:$0xff]
    %v349 = vld [vmem:[%s3 + $0x68] sm:$0xff]
    %v350 = vld [vmem:[%s3 + $0x70] sm:$0xff]
    %v351 = vld [vmem:[%s3 + $0x78] sm:$0xff]
    %v352 = vld [vmem:[%s3 + $0x80] sm:$0xff]
    %v353 = vld [vmem:[%s3 + $0x88] sm:$0xff]
    %v354 = vld [vmem:[%s3 + $0x90] sm:$0xff]
    %v355 = vld [vmem:[%s3 + $0x98] sm:$0xff]
    %v356 = vld [vmem:[%s3 + $0xa0] sm:$0xff]
    %v357 = vld [vmem:[%s3 + $0xa8] sm:$0xff]
    %v358 = vld [vmem:[%s3 + $0xb0] sm:$0xff]
    %v359 = vld [vmem:[%s3 + $0xb8] sm:$0xff]
    %v360 = vld [vmem:[%s3 + $0xc0] sm:$0xff]
    %v361 = vld [vmem:[%s3 + $0xc8] sm:$0xff]
    %v362 = vld [vmem:[%s3 + $0xd0] sm:$0xff]
    %v363 = vld [vmem:[%s3 + $0xd8] sm:$0xff]
    %v364 = vld [vmem:[%s3 + $0xe0] sm:$0xff]
    %v365 = vld [vmem:[%s3 + $0xe8] sm:$0xff]
    %v366 = vld [vmem:[%s3 + $0xf0] sm:$0xff]
    %v367 = vld [vmem:[%s3 + $0xf8] sm:$0xff]
    %v368 = vld [vmem:[%s3 + $0x100] sm:$0xff]
    %v369 = vld [vmem:[%s3 + $0x108] sm:$0xff]
    %v370 = vld [vmem:[%s3 + $0x110] sm:$0xff]
    %v371 = vld [vmem:[%s3 + $0x118] sm:$0xff]
    %v372 = vld [vmem:[%s3 + $0x120] sm:$0xff]
    %v373 = vld [vmem:[%s3 + $0x128] sm:$0xff]
    %v374 = vld [vmem:[%s3 + $0x130] sm:$0xff]
    %v375 = vld [vmem:[%s3 + $0x138] sm:$0xff]
    %v376 = vld [vmem:[%s3 + $0x140] sm:$0xff]
    %v377 = vld [vmem:[%s3 + $0x148] sm:$0xff]
    %v378 = vld [vmem:[%s3 + $0x150] sm:$0xff]
    %v379 = vld [vmem:[%s3 + $0x158] sm:$0xff]
    %v380 = vld [vmem:[%s3 + $0x160] sm:$0xff]
    %v381 = vld [vmem:[%s3 + $0x168] sm:$0xff]
    %v382 = vld [vmem:[%s3 + $0x170] sm:$0xff]
    %v383 = vld [vmem:[%s3 + $0x178] sm:$0xff]
    %v384 = vld [vmem:[%s3 + $0x180] sm:$0xff]
    %v385 = vld [vmem:[%s3 + $0x188] sm:$0xff]
    %v386 = vld [vmem:[%s3 + $0x190] sm:$0xff]
    %v387 = vld [vmem:[%s3 + $0x198] sm:$0xff]
    %v388 = vld [vmem:[%s3 + $0x1a0] sm:$0xff]
    %v389 = vld [vmem:[%s3 + $0x1a8] sm:$0xff]
    %v390 = vld [vmem:[%s3 + $0x1b0] sm:$0xff]
    %v391 = vld [vmem:[%s3 + $0x1b8] sm:$0xff]
    %v392 = vld [vmem:[%s3 + $0x1c0] sm:$0xff]
    %v393 = vld [vmem:[%s3 + $0x1c8] sm:$0xff]
    %v394 = vld [vmem:[%s3 + $0x1d0] sm:$0xff]
    %v395 = vld [vmem:[%s3 + $0x1d8] sm:$0xff]
    %v396 = vld [vmem:[%s3 + $0x1e0] sm:$0xff]
    %v397 = vld [vmem:[%s3 + $0x1e8] sm:$0xff]
    %v398 = vld [vmem:[%s3 + $0x1f0] sm:$0xff]
    %v399 = vld [vmem:[%s3 + $0x1f8] sm:$0xff]
    %s400 = scalar_lea.vmem %s5, 2
    %v401 = vld [vmem:[%s400] ss:$4 sm:$0xf]
    %v403 = vperm.slane %v401, 0
    %v404 = vperm.slane %v401, 1
    %v405 = vperm.slane %v401, 2
    %v406 = vperm.slane %v401, 3
    %v475 = vunpack.c.l.b16 %v336
    %v476 = vunpack.c.h.b16 %v336
    %v477 = vunpack.c.l.b16 %v337
    %v478 = vunpack.c.h.b16 %v337
    %v479 = vunpack.c.l.b16 %v338
    %v480 = vunpack.c.h.b16 %v338
    %v481 = vunpack.c.l.b16 %v339
    %v482 = vunpack.c.h.b16 %v339
    %v483 = vunpack.c.l.b16 %v340
    %v484 = vunpack.c.h.b16 %v340
    %v485 = vunpack.c.l.b16 %v341
    %v486 = vunpack.c.h.b16 %v341
    %v487 = vunpack.c.l.b16 %v342
    %v488 = vunpack.c.h.b16 %v342
    %v489 = vunpack.c.l.b16 %v343
    %v490 = vunpack.c.h.b16 %v343
    %v491 = vunpack.c.l.b16 %v344
    %v492 = vunpack.c.h.b16 %v344
    %v493 = vunpack.c.l.b16 %v345
    %v494 = vunpack.c.h.b16 %v345
    %v495 = vunpack.c.l.b16 %v346
    %v496 = vunpack.c.h.b16 %v346
    %v497 = vunpack.c.l.b16 %v347
    %v498 = vunpack.c.h.b16 %v347
    %v499 = vunpack.c.l.b16 %v348
    %v500 = vunpack.c.h.b16 %v348
    %v501 = vunpack.c.l.b16 %v349
    %v502 = vunpack.c.h.b16 %v349
    %v503 = vunpack.c.l.b16 %v350
    %v504 = vunpack.c.h.b16 %v350
    %v505 = vunpack.c.l.b16 %v351
    %v506 = vunpack.c.h.b16 %v351
    %v507 = vunpack.c.l.b16 %v352
    %v508 = vunpack.c.h.b16 %v352
    %v509 = vunpack.c.l.b16 %v353
    %v510 = vunpack.c.h.b16 %v353
    %v511 = vunpack.c.l.b16 %v354
    %v512 = vunpack.c.h.b16 %v354
    %v513 = vunpack.c.l.b16 %v355
    %v514 = vunpack.c.h.b16 %v355
    %v515 = vunpack.c.l.b16 %v356
    %v516 = vunpack.c.h.b16 %v356
    %v517 = vunpack.c.l.b16 %v357
    %v518 = vunpack.c.h.b16 %v357
    %v519 = vunpack.c.l.b16 %v358
    %v520 = vunpack.c.h.b16 %v358
    %v521 = vunpack.c.l.b16 %v359
    %v522 = vunpack.c.h.b16 %v359
    %v523 = vunpack.c.l.b16 %v360
    %v524 = vunpack.c.h.b16 %v360
    %v525 = vunpack.c.l.b16 %v361
    %v526 = vunpack.c.h.b16 %v361
    %v527 = vunpack.c.l.b16 %v362
    %v528 = vunpack.c.h.b16 %v362
    %v529 = vunpack.c.l.b16 %v363
    %v530 = vunpack.c.h.b16 %v363
    %v531 = vunpack.c.l.b16 %v364
    %v532 = vunpack.c.h.b16 %v364
    %v533 = vunpack.c.l.b16 %v365
    %v534 = vunpack.c.h.b16 %v365
    %v535 = vunpack.c.l.b16 %v366
    %v536 = vunpack.c.h.b16 %v366
    %v537 = vunpack.c.l.b16 %v367
    %v538 = vunpack.c.h.b16 %v367
    %v539 = vunpack.c.l.b16 %v368
    %v540 = vunpack.c.h.b16 %v368
    %v541 = vunpack.c.l.b16 %v369
    %v542 = vunpack.c.h.b16 %v369
    %v543 = vunpack.c.l.b16 %v370
    %v544 = vunpack.c.h.b16 %v370
    %v545 = vunpack.c.l.b16 %v371
    %v546 = vunpack.c.h.b16 %v371
    %v547 = vunpack.c.l.b16 %v372
    %v548 = vunpack.c.h.b16 %v372
    %v549 = vunpack.c.l.b16 %v373
    %v550 = vunpack.c.h.b16 %v373
    %v551 = vunpack.c.l.b16 %v374
    %v552 = vunpack.c.h.b16 %v374
    %v553 = vunpack.c.l.b16 %v375
    %v554 = vunpack.c.h.b16 %v375
    %v555 = vunpack.c.l.b16 %v376
    %v556 = vunpack.c.h.b16 %v376
    %v557 = vunpack.c.l.b16 %v377
    %v558 = vunpack.c.h.b16 %v377
    %v559 = vunpack.c.l.b16 %v378
    %v560 = vunpack.c.h.b16 %v378
    %v561 = vunpack.c.l.b16 %v379
    %v562 = vunpack.c.h.b16 %v379
    %v563 = vunpack.c.l.b16 %v380
    %v564 = vunpack.c.h.b16 %v380
    %v565 = vunpack.c.l.b16 %v381
    %v566 = vunpack.c.h.b16 %v381
    %v567 = vunpack.c.l.b16 %v382
    %v568 = vunpack.c.h.b16 %v382
    %v569 = vunpack.c.l.b16 %v383
    %v570 = vunpack.c.h.b16 %v383
    %v571 = vunpack.c.l.b16 %v384
    %v572 = vunpack.c.h.b16 %v384
    %v573 = vunpack.c.l.b16 %v385
    %v574 = vunpack.c.h.b16 %v385
    %v575 = vunpack.c.l.b16 %v386
    %v576 = vunpack.c.h.b16 %v386
    %v577 = vunpack.c.l.b16 %v387
    %v578 = vunpack.c.h.b16 %v387
    %v579 = vunpack.c.l.b16 %v388
    %v580 = vunpack.c.h.b16 %v388
    %v581 = vunpack.c.l.b16 %v389
    %v582 = vunpack.c.h.b16 %v389
    %v583 = vunpack.c.l.b16 %v390
    %v584 = vunpack.c.h.b16 %v390
    %v585 = vunpack.c.l.b16 %v391
    %v586 = vunpack.c.h.b16 %v391
    %v587 = vunpack.c.l.b16 %v392
    %v588 = vunpack.c.h.b16 %v392
    %v589 = vunpack.c.l.b16 %v393
    %v590 = vunpack.c.h.b16 %v393
    %v591 = vunpack.c.l.b16 %v394
    %v592 = vunpack.c.h.b16 %v394
    %v593 = vunpack.c.l.b16 %v395
    %v594 = vunpack.c.h.b16 %v395
    %v595 = vunpack.c.l.b16 %v396
    %v596 = vunpack.c.h.b16 %v396
    %v597 = vunpack.c.l.b16 %v397
    %v598 = vunpack.c.h.b16 %v397
    %v599 = vunpack.c.l.b16 %v398
    %v600 = vunpack.c.h.b16 %v398
    %v601 = vunpack.c.l.b16 %v399
    %v602 = vunpack.c.h.b16 %v399
    %v603 = vpack.c.b16 %v479, %v475
    %v604 = vpack.c.b16 %v480, %v476
    %v605 = vpack.c.b16 %v481, %v477
    %v606 = vpack.c.b16 %v482, %v478
    %v607 = vpack.c.b16 %v487, %v483
    %v608 = vpack.c.b16 %v488, %v484
    %v609 = vpack.c.b16 %v489, %v485
    %v610 = vpack.c.b16 %v490, %v486
    %v611 = vpack.c.b16 %v495, %v491
    %v612 = vpack.c.b16 %v496, %v492
    %v613 = vpack.c.b16 %v497, %v493
    %v614 = vpack.c.b16 %v498, %v494
    %v615 = vpack.c.b16 %v503, %v499
    %v616 = vpack.c.b16 %v504, %v500
    %v617 = vpack.c.b16 %v505, %v501
    %v618 = vpack.c.b16 %v506, %v502
    %v619 = vpack.c.b16 %v511, %v507
    %v620 = vpack.c.b16 %v512, %v508
    %v621 = vpack.c.b16 %v513, %v509
    %v622 = vpack.c.b16 %v514, %v510
    %v623 = vpack.c.b16 %v519, %v515
    %v624 = vpack.c.b16 %v520, %v516
    %v625 = vpack.c.b16 %v521, %v517
    %v626 = vpack.c.b16 %v522, %v518
    %v627 = vpack.c.b16 %v527, %v523
    %v628 = vpack.c.b16 %v528, %v524
    %v629 = vpack.c.b16 %v529, %v525
    %v630 = vpack.c.b16 %v530, %v526
    %v631 = vpack.c.b16 %v535, %v531
    %v632 = vpack.c.b16 %v536, %v532
    %v633 = vpack.c.b16 %v537, %v533
    %v634 = vpack.c.b16 %v538, %v534
    %v635 = vpack.c.b16 %v543, %v539
    %v636 = vpack.c.b16 %v544, %v540
    %v637 = vpack.c.b16 %v545, %v541
    %v638 = vpack.c.b16 %v546, %v542
    %v639 = vpack.c.b16 %v551, %v547
    %v640 = vpack.c.b16 %v552, %v548
    %v641 = vpack.c.b16 %v553, %v549
    %v642 = vpack.c.b16 %v554, %v550
    %v643 = vpack.c.b16 %v559, %v555
    %v644 = vpack.c.b16 %v560, %v556
    %v645 = vpack.c.b16 %v561, %v557
    %v646 = vpack.c.b16 %v562, %v558
    %v647 = vpack.c.b16 %v567, %v563
    %v648 = vpack.c.b16 %v568, %v564
    %v649 = vpack.c.b16 %v569, %v565
    %v650 = vpack.c.b16 %v570, %v566
    %v651 = vpack.c.b16 %v575, %v571
    %v652 = vpack.c.b16 %v576, %v572
    %v653 = vpack.c.b16 %v577, %v573
    %v654 = vpack.c.b16 %v578, %v574
    %v655 = vpack.c.b16 %v583, %v579
    %v656 = vpack.c.b16 %v584, %v580
    %v657 = vpack.c.b16 %v585, %v581
    %v658 = vpack.c.b16 %v586, %v582
    %v659 = vpack.c.b16 %v591, %v587
    %v660 = vpack.c.b16 %v592, %v588
    %v661 = vpack.c.b16 %v593, %v589
    %v662 = vpack.c.b16 %v594, %v590
    %v663 = vpack.c.b16 %v599, %v595
    %v664 = vpack.c.b16 %v600, %v596
    %v665 = vpack.c.b16 %v601, %v597
    %v666 = vpack.c.b16 %v602, %v598
    %731 = vmatpush.bf16.msra.mxu0 %v631
    %732 = vmatpush.bf16.msra.mxu0 %v627
    %733 = vmatpush.bf16.msra.mxu0 %v623
    %734 = vmatpush.bf16.msra.mxu0 %v619
    %735 = vmatpush.bf16.msra.mxu0 %v615
    %736 = vmatpush.bf16.msra.mxu0 %v611
    %737 = vmatpush.bf16.msra.mxu0 %v607
    %738 = vmatpush.bf16.msra.mxu0 %v603
    %739 = vmatmul.bf16.gmra.mxu0 %v334
    %v740 = vpop.f32.mrf.mxu0
    %v741 = vadd.f32 %v403, %v740
    %v742 = vpop.f32.mrf.mxu0
    %743 = vdwg.mxu0
    %744 = vmatpush.bf16.msra.mxu0 %v663
    %745 = vmatpush.bf16.msra.mxu0 %v659
    %746 = vmatpush.bf16.msra.mxu0 %v655
    %747 = vmatpush.bf16.msra.mxu0 %v651
    %748 = vmatpush.bf16.msra.mxu0 %v647
    %749 = vmatpush.bf16.msra.mxu0 %v643
    %750 = vmatpush.bf16.msra.mxu0 %v639
    %751 = vmatpush.bf16.msra.mxu0 %v635
    %752 = vmatmul.bf16.gmra.mxu0 %v335
    %v753 = vpop.f32.mrf.mxu0
    %v754 = vadd.f32 %v741, %v753
    %v755 = vpop.f32.mrf.mxu0
    %756 = vdwg.mxu0
    %757 = vmatpush.bf16.msra.mxu0 %v632
    %758 = vmatpush.bf16.msra.mxu0 %v628
    %759 = vmatpush.bf16.msra.mxu0 %v624
    %760 = vmatpush.bf16.msra.mxu0 %v620
    %761 = vmatpush.bf16.msra.mxu0 %v616
    %762 = vmatpush.bf16.msra.mxu0 %v612
    %763 = vmatpush.bf16.msra.mxu0 %v608
    %764 = vmatpush.bf16.msra.mxu0 %v604
    %765 = vmatmul.bf16.gmra.mxu0 %v334
    %v766 = vpop.f32.mrf.mxu0
    %v767 = vadd.f32 %v404, %v766
    %v768 = vpop.f32.mrf.mxu0
    %769 = vdwg.mxu0
    %770 = vmatpush.bf16.msra.mxu0 %v664
    %771 = vmatpush.bf16.msra.mxu0 %v660
    %772 = vmatpush.bf16.msra.mxu0 %v656
    %773 = vmatpush.bf16.msra.mxu0 %v652
    %774 = vmatpush.bf16.msra.mxu0 %v648
    %775 = vmatpush.bf16.msra.mxu0 %v644
    %776 = vmatpush.bf16.msra.mxu0 %v640
    %777 = vmatpush.bf16.msra.mxu0 %v636
    %778 = vmatmul.bf16.gmra.mxu0 %v335
    %v779 = vpop.f32.mrf.mxu0
    %v780 = vadd.f32 %v767, %v779
    %v781 = vpop.f32.mrf.mxu0
    %782 = vdwg.mxu0
    %783 = vmatpush.bf16.msra.mxu0 %v633
    %784 = vmatpush.bf16.msra.mxu0 %v629
    %785 = vmatpush.bf16.msra.mxu0 %v625
    %786 = vmatpush.bf16.msra.mxu0 %v621
    %787 = vmatpush.bf16.msra.mxu0 %v617
    %788 = vmatpush.bf16.msra.mxu0 %v613
    %789 = vmatpush.bf16.msra.mxu0 %v609
    %790 = vmatpush.bf16.msra.mxu0 %v605
    %791 = vmatmul.bf16.gmra.mxu0 %v334
    %v792 = vpop.f32.mrf.mxu0
    %v793 = vadd.f32 %v405, %v792
    %v794 = vpop.f32.mrf.mxu0
    %795 = vdwg.mxu0
    %796 = vmatpush.bf16.msra.mxu0 %v665
    %797 = vmatpush.bf16.msra.mxu0 %v661
    %798 = vmatpush.bf16.msra.mxu0 %v657
    %799 = vmatpush.bf16.msra.mxu0 %v653
    %800 = vmatpush.bf16.msra.mxu0 %v649
    %801 = vmatpush.bf16.msra.mxu0 %v645
    %802 = vmatpush.bf16.msra.mxu0 %v641
    %803 = vmatpush.bf16.msra.mxu0 %v637
    %804 = vmatmul.bf16.gmra.mxu0 %v335
    %v805 = vpop.f32.mrf.mxu0
    %v806 = vadd.f32 %v793, %v805
    %v807 = vpop.f32.mrf.mxu0
    %808 = vdwg.mxu0
    %809 = vmatpush.bf16.msra.mxu0 %v634
    %810 = vmatpush.bf16.msra.mxu0 %v630
    %811 = vmatpush.bf16.msra.mxu0 %v626
    %812 = vmatpush.bf16.msra.mxu0 %v622
    %813 = vmatpush.bf16.msra.mxu0 %v618
    %814 = vmatpush.bf16.msra.mxu0 %v614
    %815 = vmatpush.bf16.msra.mxu0 %v610
    %816 = vmatpush.bf16.msra.mxu0 %v606
    %817 = vmatmul.bf16.gmra.mxu0 %v334
    %v818 = vpop.f32.mrf.mxu0
    %v819 = vadd.f32 %v406, %v818
    %v820 = vpop.f32.mrf.mxu0
    %821 = vdwg.mxu0
    %822 = vmatpush.bf16.msra.mxu0 %v666
    %823 = vmatpush.bf16.msra.mxu0 %v662
    %824 = vmatpush.bf16.msra.mxu0 %v658
    %825 = vmatpush.bf16.msra.mxu0 %v654
    %826 = vmatpush.bf16.msra.mxu0 %v650
    %827 = vmatpush.bf16.msra.mxu0 %v646
    %828 = vmatpush.bf16.msra.mxu0 %v642
    %829 = vmatpush.bf16.msra.mxu0 %v638
    %830 = vmatmul.bf16.gmra.mxu0 %v335
    %v831 = vpop.f32.mrf.mxu0
    %v832 = vadd.f32 %v819, %v831
    %v833 = vpop.f32.mrf.mxu0
    %834 = vdwg.mxu0
    %vm835 = vcmp.gt.f32.partialorder %v754, 0.0
    %vm836 = vcmp.gt.f32.partialorder %v780, 0.0
    %vm837 = vcmp.gt.f32.partialorder %v806, 0.0
    %vm838 = vcmp.gt.f32.partialorder %v832, 0.0
    %v839 = vmul.f32 %v754, 0.01
    %v840 = vmul.f32 %v780, 0.01
    %v841 = vmul.f32 %v806, 0.01
    %v842 = vmul.f32 %v832, 0.01
    %v843 = vsel %vm835, %v754, %v839
    %v844 = vsel %vm836, %v780, %v840
    %v845 = vsel %vm837, %v806, %v841
    %v846 = vsel %vm838, %v832, %v842
    %v847 = vrot.slane %v843, 4
    %v848 = vadd.f32 %v843, %v847
    %v849 = vrot.slane %v848, 2
    %v850 = vadd.f32 %v848, %v849
    %v851 = vrot.slane %v850, 1
    %v852 = vadd.f32 %v850, %v851
    %v853 = vrot.slane %v844, 4
    %v854 = vadd.f32 %v844, %v853
    %v855 = vrot.slane %v854, 2
    %v856 = vadd.f32 %v854, %v855
    %v857 = vrot.slane %v856, 1
    %v858 = vadd.f32 %v856, %v857
    %v859 = vrot.slane %v845, 4
    %v860 = vadd.f32 %v845, %v859
    %v861 = vrot.slane %v860, 2
    %v862 = vadd.f32 %v860, %v861
    %v863 = vrot.slane %v862, 1
    %v864 = vadd.f32 %v862, %v863
    %v865 = vrot.slane %v846, 4
    %v866 = vadd.f32 %v846, %v865
    %v867 = vrot.slane %v866, 2
    %v868 = vadd.f32 %v866, %v867
    %v869 = vrot.slane %v868, 1
    %v870 = vadd.f32 %v868, %v869
    %v871 = vmul.f32 %v852, %v119
    %v872 = vmul.f32 %v858, %v119
    %v873 = vmul.f32 %v864, %v119
    %v874 = vmul.f32 %v870, %v119
    %v875 = vsub.f32 %v843, %v871
    %v876 = vsub.f32 %v844, %v872
    %v877 = vsub.f32 %v845, %v873
    %v878 = vsub.f32 %v846, %v874
    %v879 = vmul.f32 %v875, %v875
    %v880 = vmul.f32 %v876, %v876
    %v881 = vmul.f32 %v877, %v877
    %v882 = vmul.f32 %v878, %v878
    %v883 = vrot.slane %v879, 4
    %v884 = vadd.f32 %v879, %v883
    %v885 = vrot.slane %v884, 2
    %v886 = vadd.f32 %v884, %v885
    %v887 = vrot.slane %v886, 1
    %v888 = vadd.f32 %v886, %v887
    %v889 = vrot.slane %v880, 4
    %v890 = vadd.f32 %v880, %v889
    %v891 = vrot.slane %v890, 2
    %v892 = vadd.f32 %v890, %v891
    %v893 = vrot.slane %v892, 1
    %v894 = vadd.f32 %v892, %v893
    %v895 = vrot.slane %v881, 4
    %v896 = vadd.f32 %v881, %v895
    %v897 = vrot.slane %v896, 2
    %v898 = vadd.f32 %v896, %v897
    %v899 = vrot.slane %v898, 1
    %v900 = vadd.f32 %v898, %v899
    %v901 = vrot.slane %v882, 4
    %v902 = vadd.f32 %v882, %v901
    %v903 = vrot.slane %v902, 2
    %v904 = vadd.f32 %v902, %v903
    %v905 = vrot.slane %v904, 1
    %v906 = vadd.f32 %v904, %v905
    %v907 = vmul.f32 %v888, %v119
    %v908 = vmul.f32 %v894, %v119
    %v909 = vmul.f32 %v900, %v119
    %v910 = vmul.f32 %v906, %v119
    %v911 = vadd.f32 %v907, 1e-05
    %v912 = vadd.f32 %v908, 1e-05
    %v913 = vadd.f32 %v909, 1e-05
    %v914 = vadd.f32 %v910, 1e-05
    %v915 = vrsqrt.pop %v911
    %v916 = vmul.f32 %v915, %v911
    %v917 = vmul.f32 %v916, %v915
    %v918 = vmul.f32 0.5, %v917
    %v919 = vsub.f32 1.5, %v918
    %v920 = vmul.f32 %v915, %v919
    %vm921 = vweird.f32 %v911
    %vm922 = vweird.f32 %v915
    %vm923 = vmor %vm921, %vm922
    %v924 = vsel %vm923, %v915, %v920
    %v925 = vrsqrt.pop %v912
    %v926 = vmul.f32 %v925, %v912
    %v927 = vmul.f32 %v926, %v925
    %v928 = vmul.f32 0.5, %v927
    %v929 = vsub.f32 1.5, %v928
    %v930 = vmul.f32 %v925, %v929
    %vm931 = vweird.f32 %v912
    %vm932 = vweird.f32 %v925
    %vm933 = vmor %vm931, %vm932
    %v934 = vsel %vm933, %v925, %v930
    %v935 = vrsqrt.pop %v913
    %v936 = vmul.f32 %v935, %v913
    %v937 = vmul.f32 %v936, %v935
    %v938 = vmul.f32 0.5, %v937
    %v939 = vsub.f32 1.5, %v938
    %v940 = vmul.f32 %v935, %v939
    %vm941 = vweird.f32 %v913
    %vm942 = vweird.f32 %v935
    %vm943 = vmor %vm941, %vm942
    %v944 = vsel %vm943, %v935, %v940
    %v945 = vrsqrt.pop %v914
    %v946 = vmul.f32 %v945, %v914
    %v947 = vmul.f32 %v946, %v945
    %v948 = vmul.f32 0.5, %v947
    %v949 = vsub.f32 1.5, %v948
    %v950 = vmul.f32 %v945, %v949
    %vm951 = vweird.f32 %v914
    %vm952 = vweird.f32 %v945
    %vm953 = vmor %vm951, %vm952
    %v954 = vsel %vm953, %v945, %v950
    %v955 = vmul.f32 %v875, %v924
    %v956 = vmul.f32 %v876, %v934
    %v957 = vmul.f32 %v877, %v944
    %v958 = vmul.f32 %v878, %v954
    %v959 = vpack.c.bf16 %v955, %v955
    %v960 = vpack.c.bf16 %v956, %v956
    %v961 = vpack.c.bf16 %v957, %v957
    %v962 = vpack.c.bf16 %v958, %v958
    %v963 = vld [vmem:[%s4] sm:$0xf]
    %v964 = vld [vmem:[%s4 + $0x4] sm:$0xf]
    %v965 = vld [vmem:[%s4 + $0x8] sm:$0xf]
    %v966 = vld [vmem:[%s4 + $0xc] sm:$0xf]
    %v967 = vld [vmem:[%s4 + $0x10] sm:$0xf]
    %v968 = vld [vmem:[%s4 + $0x14] sm:$0xf]
    %v969 = vld [vmem:[%s4 + $0x18] sm:$0xf]
    %v970 = vld [vmem:[%s4 + $0x1c] sm:$0xf]
    %v971 = vld [vmem:[%s4 + $0x20] sm:$0xf]
    %v972 = vld [vmem:[%s4 + $0x24] sm:$0xf]
    %v973 = vld [vmem:[%s4 + $0x28] sm:$0xf]
    %v974 = vld [vmem:[%s4 + $0x2c] sm:$0xf]
    %v975 = vld [vmem:[%s4 + $0x30] sm:$0xf]
    %v976 = vld [vmem:[%s4 + $0x34] sm:$0xf]
    %v977 = vld [vmem:[%s4 + $0x38] sm:$0xf]
    %v978 = vld [vmem:[%s4 + $0x3c] sm:$0xf]
    %v979 = vld [vmem:[%s4 + $0x40] sm:$0xf]
    %v980 = vld [vmem:[%s4 + $0x44] sm:$0xf]
    %v981 = vld [vmem:[%s4 + $0x48] sm:$0xf]
    %v982 = vld [vmem:[%s4 + $0x4c] sm:$0xf]
    %v983 = vld [vmem:[%s4 + $0x50] sm:$0xf]
    %v984 = vld [vmem:[%s4 + $0x54] sm:$0xf]
    %v985 = vld [vmem:[%s4 + $0x58] sm:$0xf]
    %v986 = vld [vmem:[%s4 + $0x5c] sm:$0xf]
    %v987 = vld [vmem:[%s4 + $0x60] sm:$0xf]
    %v988 = vld [vmem:[%s4 + $0x64] sm:$0xf]
    %v989 = vld [vmem:[%s4 + $0x68] sm:$0xf]
    %v990 = vld [vmem:[%s4 + $0x6c] sm:$0xf]
    %v991 = vld [vmem:[%s4 + $0x70] sm:$0xf]
    %v992 = vld [vmem:[%s4 + $0x74] sm:$0xf]
    %v993 = vld [vmem:[%s4 + $0x78] sm:$0xf]
    %v994 = vld [vmem:[%s4 + $0x7c] sm:$0xf]
    %v995 = vld [vmem:[%s4 + $0x80] sm:$0xf]
    %v996 = vld [vmem:[%s4 + $0x84] sm:$0xf]
    %v997 = vld [vmem:[%s4 + $0x88] sm:$0xf]
    %v998 = vld [vmem:[%s4 + $0x8c] sm:$0xf]
    %v999 = vld [vmem:[%s4 + $0x90] sm:$0xf]
    %v1000 = vld [vmem:[%s4 + $0x94] sm:$0xf]
    %v1001 = vld [vmem:[%s4 + $0x98] sm:$0xf]
    %v1002 = vld [vmem:[%s4 + $0x9c] sm:$0xf]
    %v1003 = vld [vmem:[%s4 + $0xa0] sm:$0xf]
    %v1004 = vld [vmem:[%s4 + $0xa4] sm:$0xf]
    %v1005 = vld [vmem:[%s4 + $0xa8] sm:$0xf]
    %v1006 = vld [vmem:[%s4 + $0xac] sm:$0xf]
    %v1007 = vld [vmem:[%s4 + $0xb0] sm:$0xf]
    %v1008 = vld [vmem:[%s4 + $0xb4] sm:$0xf]
    %v1009 = vld [vmem:[%s4 + $0xb8] sm:$0xf]
    %v1010 = vld [vmem:[%s4 + $0xbc] sm:$0xf]
    %v1011 = vld [vmem:[%s4 + $0xc0] sm:$0xf]
    %v1012 = vld [vmem:[%s4 + $0xc4] sm:$0xf]
    %v1013 = vld [vmem:[%s4 + $0xc8] sm:$0xf]
    %v1014 = vld [vmem:[%s4 + $0xcc] sm:$0xf]
    %v1015 = vld [vmem:[%s4 + $0xd0] sm:$0xf]
    %v1016 = vld [vmem:[%s4 + $0xd4] sm:$0xf]
    %v1017 = vld [vmem:[%s4 + $0xd8] sm:$0xf]
    %v1018 = vld [vmem:[%s4 + $0xdc] sm:$0xf]
    %v1019 = vld [vmem:[%s4 + $0xe0] sm:$0xf]
    %v1020 = vld [vmem:[%s4 + $0xe4] sm:$0xf]
    %v1021 = vld [vmem:[%s4 + $0xe8] sm:$0xf]
    %v1022 = vld [vmem:[%s4 + $0xec] sm:$0xf]
    %v1023 = vld [vmem:[%s4 + $0xf0] sm:$0xf]
    %v1024 = vld [vmem:[%s4 + $0xf4] sm:$0xf]
    %v1025 = vld [vmem:[%s4 + $0xf8] sm:$0xf]
    %v1026 = vld [vmem:[%s4 + $0xfc] sm:$0xf]
    %v1027 = vld [vmem:[%s5 + $0x3] sm:$0x1]
    %v1028 = vperm.slane %v1027, 0
    %v1093 = vunpack.c.l.b16 %v963
    %v1094 = vunpack.c.l.b16 %v964
    %v1095 = vunpack.c.l.b16 %v965
    %v1096 = vunpack.c.l.b16 %v966
    %v1097 = vunpack.c.l.b16 %v967
    %v1098 = vunpack.c.l.b16 %v968
    %v1099 = vunpack.c.l.b16 %v969
    %v1100 = vunpack.c.l.b16 %v970
    %v1101 = vunpack.c.l.b16 %v971
    %v1102 = vunpack.c.l.b16 %v972
    %v1103 = vunpack.c.l.b16 %v973
    %v1104 = vunpack.c.l.b16 %v974
    %v1105 = vunpack.c.l.b16 %v975
    %v1106 = vunpack.c.l.b16 %v976
    %v1107 = vunpack.c.l.b16 %v977
    %v1108 = vunpack.c.l.b16 %v978
    %v1109 = vunpack.c.l.b16 %v979
    %v1110 = vunpack.c.l.b16 %v980
    %v1111 = vunpack.c.l.b16 %v981
    %v1112 = vunpack.c.l.b16 %v982
    %v1113 = vunpack.c.l.b16 %v983
    %v1114 = vunpack.c.l.b16 %v984
    %v1115 = vunpack.c.l.b16 %v985
    %v1116 = vunpack.c.l.b16 %v986
    %v1117 = vunpack.c.l.b16 %v987
    %v1118 = vunpack.c.l.b16 %v988
    %v1119 = vunpack.c.l.b16 %v989
    %v1120 = vunpack.c.l.b16 %v990
    %v1121 = vunpack.c.l.b16 %v991
    %v1122 = vunpack.c.l.b16 %v992
    %v1123 = vunpack.c.l.b16 %v993
    %v1124 = vunpack.c.l.b16 %v994
    %v1125 = vunpack.c.l.b16 %v995
    %v1126 = vunpack.c.l.b16 %v996
    %v1127 = vunpack.c.l.b16 %v997
    %v1128 = vunpack.c.l.b16 %v998
    %v1129 = vunpack.c.l.b16 %v999
    %v1130 = vunpack.c.l.b16 %v1000
    %v1131 = vunpack.c.l.b16 %v1001
    %v1132 = vunpack.c.l.b16 %v1002
    %v1133 = vunpack.c.l.b16 %v1003
    %v1134 = vunpack.c.l.b16 %v1004
    %v1135 = vunpack.c.l.b16 %v1005
    %v1136 = vunpack.c.l.b16 %v1006
    %v1137 = vunpack.c.l.b16 %v1007
    %v1138 = vunpack.c.l.b16 %v1008
    %v1139 = vunpack.c.l.b16 %v1009
    %v1140 = vunpack.c.l.b16 %v1010
    %v1141 = vunpack.c.l.b16 %v1011
    %v1142 = vunpack.c.l.b16 %v1012
    %v1143 = vunpack.c.l.b16 %v1013
    %v1144 = vunpack.c.l.b16 %v1014
    %v1145 = vunpack.c.l.b16 %v1015
    %v1146 = vunpack.c.l.b16 %v1016
    %v1147 = vunpack.c.l.b16 %v1017
    %v1148 = vunpack.c.l.b16 %v1018
    %v1149 = vunpack.c.l.b16 %v1019
    %v1150 = vunpack.c.l.b16 %v1020
    %v1151 = vunpack.c.l.b16 %v1021
    %v1152 = vunpack.c.l.b16 %v1022
    %v1153 = vunpack.c.l.b16 %v1023
    %v1154 = vunpack.c.l.b16 %v1024
    %v1155 = vunpack.c.l.b16 %v1025
    %v1156 = vunpack.c.l.b16 %v1026
    %v1157 = vpack.c.b16 %v1094, %v1093
    %v1158 = vpack.c.b16 %v1096, %v1095
    %v1159 = vpack.c.b16 %v1098, %v1097
    %v1160 = vpack.c.b16 %v1100, %v1099
    %v1161 = vpack.c.b16 %v1102, %v1101
    %v1162 = vpack.c.b16 %v1104, %v1103
    %v1163 = vpack.c.b16 %v1106, %v1105
    %v1164 = vpack.c.b16 %v1108, %v1107
    %v1165 = vpack.c.b16 %v1110, %v1109
    %v1166 = vpack.c.b16 %v1112, %v1111
    %v1167 = vpack.c.b16 %v1114, %v1113
    %v1168 = vpack.c.b16 %v1116, %v1115
    %v1169 = vpack.c.b16 %v1118, %v1117
    %v1170 = vpack.c.b16 %v1120, %v1119
    %v1171 = vpack.c.b16 %v1122, %v1121
    %v1172 = vpack.c.b16 %v1124, %v1123
    %v1173 = vpack.c.b16 %v1126, %v1125
    %v1174 = vpack.c.b16 %v1128, %v1127
    %v1175 = vpack.c.b16 %v1130, %v1129
    %v1176 = vpack.c.b16 %v1132, %v1131
    %v1177 = vpack.c.b16 %v1134, %v1133
    %v1178 = vpack.c.b16 %v1136, %v1135
    %v1179 = vpack.c.b16 %v1138, %v1137
    %v1180 = vpack.c.b16 %v1140, %v1139
    %v1181 = vpack.c.b16 %v1142, %v1141
    %v1182 = vpack.c.b16 %v1144, %v1143
    %v1183 = vpack.c.b16 %v1146, %v1145
    %v1184 = vpack.c.b16 %v1148, %v1147
    %v1185 = vpack.c.b16 %v1150, %v1149
    %v1186 = vpack.c.b16 %v1152, %v1151
    %v1187 = vpack.c.b16 %v1154, %v1153
    %v1188 = vpack.c.b16 %v1156, %v1155
    %1221 = vmatpush.bf16.msra.mxu0 %v1164
    %1222 = vmatpush.bf16.msra.mxu0 %v1163
    %1223 = vmatpush.bf16.msra.mxu0 %v1162
    %1224 = vmatpush.bf16.msra.mxu0 %v1161
    %1225 = vmatpush.bf16.msra.mxu0 %v1160
    %1226 = vmatpush.bf16.msra.mxu0 %v1159
    %1227 = vmatpush.bf16.msra.mxu0 %v1158
    %1228 = vmatpush.bf16.msra.mxu0 %v1157
    %1229 = vmatmul.bf16.gmra.mxu0 %v959
    %v1230 = vpop.f32.mrf.mxu0
    %v1231 = vadd.f32 %v1028, %v1230
    %v1232 = vpop.f32.mrf.mxu0
    %1233 = vdwg.mxu0
    %1234 = vmatpush.bf16.msra.mxu0 %v1172
    %1235 = vmatpush.bf16.msra.mxu0 %v1171
    %1236 = vmatpush.bf16.msra.mxu0 %v1170
    %1237 = vmatpush.bf16.msra.mxu0 %v1169
    %1238 = vmatpush.bf16.msra.mxu0 %v1168
    %1239 = vmatpush.bf16.msra.mxu0 %v1167
    %1240 = vmatpush.bf16.msra.mxu0 %v1166
    %1241 = vmatpush.bf16.msra.mxu0 %v1165
    %1242 = vmatmul.bf16.gmra.mxu0 %v960
    %v1243 = vpop.f32.mrf.mxu0
    %v1244 = vadd.f32 %v1231, %v1243
    %v1245 = vpop.f32.mrf.mxu0
    %1246 = vdwg.mxu0
    %1247 = vmatpush.bf16.msra.mxu0 %v1180
    %1248 = vmatpush.bf16.msra.mxu0 %v1179
    %1249 = vmatpush.bf16.msra.mxu0 %v1178
    %1250 = vmatpush.bf16.msra.mxu0 %v1177
    %1251 = vmatpush.bf16.msra.mxu0 %v1176
    %1252 = vmatpush.bf16.msra.mxu0 %v1175
    %1253 = vmatpush.bf16.msra.mxu0 %v1174
    %1254 = vmatpush.bf16.msra.mxu0 %v1173
    %1255 = vmatmul.bf16.gmra.mxu0 %v961
    %v1256 = vpop.f32.mrf.mxu0
    %v1257 = vadd.f32 %v1244, %v1256
    %v1258 = vpop.f32.mrf.mxu0
    %1259 = vdwg.mxu0
    %1260 = vmatpush.bf16.msra.mxu0 %v1188
    %1261 = vmatpush.bf16.msra.mxu0 %v1187
    %1262 = vmatpush.bf16.msra.mxu0 %v1186
    %1263 = vmatpush.bf16.msra.mxu0 %v1185
    %1264 = vmatpush.bf16.msra.mxu0 %v1184
    %1265 = vmatpush.bf16.msra.mxu0 %v1183
    %1266 = vmatpush.bf16.msra.mxu0 %v1182
    %1267 = vmatpush.bf16.msra.mxu0 %v1181
    %1268 = vmatmul.bf16.gmra.mxu0 %v962
    %v1269 = vpop.f32.mrf.mxu0
    %v1270 = vadd.f32 %v1257, %v1269
    %v1271 = vpop.f32.mrf.mxu0
    %1272 = vdwg.mxu0
    %v1273 = vtanh.pop %v1270
    %1274 = vst [vmem:[#allocation2] sm:$0xff] %v1273
    // Predicated region
    $region26: #{generator_forward.1} parent=1 // pred_check
      _
    $region27: #{generator_forward.1} parent=1 // pred_check_branch
      %1276 = sbr.rel (0) target = $region29
    $region28: #{generator_forward.1} parent=1 // pred_region
      %1278 = vsyncadd [#allocation3], 0
      %s1280 = sshll.u32 [#allocation2], 4
      %s1281 = int_to_ptr.vmem [resolvable:$true] %s1280
      %s1282 = sshll.u32 %s6, 4
      %s1283 = int_to_ptr.hbm [resolvable:$true] %s1282
      %1285 = dma.vmem_to_hbm [thread:$0]  %s1281, 128, %s1283, [#allocation3]
    $region29: #{generator_forward.1} parent=1 // pred_fallthru
      _
    // Predicated region
    $region30: #{generator_forward.1} parent=1 // pred_check
      _
    $region31: #{generator_forward.1} parent=1 // pred_check_branch
      %1287 = sbr.rel (0) target = $region33
    $region32: #{generator_forward.1} parent=1 // pred_region
      %1289 = dma.done [#allocation3], 128
    $region33: #{generator_forward.1} parent=1 // pred_fallthru
      _
    %1290 = vsyncpa [#allocation3], 1

</llo_original>
